<compile_context>
chip_gen: v7x
topology: tpu7x:2x2x1
jax: 0.10.0
libtpu: 0.0.40
codegen_flags: <defaults>
</compile_context>

<pallas_src>
import functools

import jax
import jax.numpy as jnp
from jax.experimental import pallas as pl
from jax.experimental.pallas import tpu as pltpu


def _round_up(x, m):
    return ((x + m - 1) // m) * m


def _physical_vmem_bytes():
    # Trace-time hardware query; fall back to the smallest (v7x per-TC) VMEM.
    try:
        return int(pltpu.get_tpu_info().vmem_capacity_bytes)
    except Exception:
        return 64 * 1024 * 1024


def span_gate_kernel(spans_ref, w1_ref, b1_ref, w2_ref, b2_ref, out_ref,
                     *, width, span_dim):
    # spans_ref: (tm, W*D)   tile of flattened spans_tensor
    # w1_ref:    (D, Hp)     first Linear weight (in, out), Hp = H padded to 128
    # b1_ref:    (1, Hp)     first Linear bias (zero in padded lanes)
    # w2_ref:    (1, Hp)     second Linear weight as a row (zero in padded lanes)
    # b2_ref:    (1, 1)      second Linear bias, SMEM scalar
    # out_ref:   (1, 1, tm)  lane-dense output row for this tile
    tm = out_ref.shape[-1]

    x = spans_ref[...]                                             # (tm, W*D)

    # Max-pool over span width: unrolled elementwise maximum over lane slices
    # (pure VPU + cheap lane shifts that co-issue with the streaming DMA).
    pooled = x[:, :span_dim]
    for w in range(1, width):
        pooled = jnp.maximum(pooled, x[:, w * span_dim:(w + 1) * span_dim])

    # Linear(span_dim -> H) + ReLU (MXU matmul, f32 accumulate).
    h = jnp.dot(pooled, w1_ref[...],
                preferred_element_type=jnp.float32) + b1_ref[...]  # (tm, Hp)
    h = jnp.maximum(h, 0.0)

    # Linear(H -> 1): VPU multiply + lane reduction.
    logit = jnp.sum(h * w2_ref[...], axis=-1) + b2_ref[0, 0]       # (tm,)

    out_ref[...] = logit.reshape(1, 1, tm)


def span_gate_forward(spans_tensor, spans_mask, params, *, tm_max=2048):
    """spans_tensor: (B*N, W, D); spans_mask: (B, N, W) (shapes only, as in the module).

    Returns gate_logit of shape (B, N).
    """
    batch_size, num_spans, _ = spans_mask.shape
    M, W, D = spans_tensor.shape
    w1, b1, w2, b2 = params
    H = w1.shape[1]

    # --- pad hidden dim to a full 128-lane vreg (bit-exact: padded b1/w2 entries are 0)
    H_pad = _round_up(H, 128)
    if H_pad != H:
        w1 = jnp.pad(w1, ((0, 0), (0, H_pad - H)))
        b1 = jnp.pad(b1, ((0, 0), (0, H_pad - H)))
        w2 = jnp.pad(w2, ((0, H_pad - H), (0, 0)))
    w2_row = w2.reshape(1, H_pad)
    b2 = b2.reshape(1, 1)

    # --- flatten (W, D) into the lane axis (free: trailing dims are contiguous).
    WD = W * D
    spans_flat = spans_tensor.reshape(M, WD)
    WD_pad = _round_up(WD, 128)                    # lanes of one (8,128)-tiled row block

    # --- VMEM budget: cap tm so the double-buffered spans blocks + resident weights
    # stay well under physical VMEM (64 MiB per TC on v7x, 128 MiB on v5e/v6e).
    vmem_phys = _physical_vmem_bytes()
    vmem_ceiling = (vmem_phys * 3) // 4            # leave room for compiler scratch
    headroom = 16 * 1024 * 1024                    # weights / out / compiler internals
    spans_budget = max(2 * 8 * WD_pad * 4, vmem_ceiling - headroom)
    tm_vmem = max(8, (spans_budget // (2 * WD_pad * 4)) // 8 * 8)
    tm_cap = max(8, min(tm_max, tm_vmem))

    # --- choose row tiling: large tiles (amortize ~0.35us/step pipeline overhead),
    # sublane aligned, EVEN tile count for the v7x 2-TC megacore split, minimal pad.
    M8 = _round_up(M, 8)
    if M8 <= 8:
        n_tiles, tm = 1, 8
    elif M8 <= 2 * tm_cap:
        n_tiles = 2
        tm = _round_up(pl.cdiv(M8, 2), 8)
    else:
        n_tiles = 2 * pl.cdiv(M8, 2 * tm_cap)      # even grid, tiles <= tm_cap
        tm = _round_up(pl.cdiv(M8, n_tiles), 8)
    M_pad = tm * n_tiles
    if M_pad != M:
        spans_flat = jnp.pad(spans_flat, ((0, M_pad - M), (0, 0)))

    # --- explicit VMEM limit from the actual (lane-padded) block footprints.
    spans_bytes = 2 * tm * WD_pad * 4                               # double-buffered
    w1_bytes = _round_up(D, 8) * H_pad * 4                          # resident
    small_bytes = 2 * 8 * H_pad * 4 + 2 * 8 * _round_up(tm, 128) * 4  # b1,w2 + out bufs
    vmem_limit = int(min(vmem_ceiling,
                         spans_bytes + w1_bytes + small_bytes + headroom))

    # --- advisory cost estimate: this kernel is HBM-bandwidth bound.
    flops = M_pad * ((W - 1) * D + 2 * D * H_pad + 3 * H_pad + 1)
    bytes_accessed = 4 * (M_pad * WD + M_pad + D * H_pad + 2 * H_pad + 1)

    kernel = functools.partial(span_gate_kernel, width=W, span_dim=D)

    out = pl.pallas_call(
        kernel,
        out_shape=jax.ShapeDtypeStruct((n_tiles, 1, tm), jnp.float32),
        grid_spec=pltpu.PrefetchScalarGridSpec(
            num_scalar_prefetch=0,
            grid=(n_tiles,),
            in_specs=[
                pl.BlockSpec((tm, WD), lambda i: (i, 0)),            # spans tile (streamed)
                pl.BlockSpec((D, H_pad), lambda i: (0, 0)),          # w1 (resident)
                pl.BlockSpec((1, H_pad), lambda i: (0, 0)),          # b1 (resident)
                pl.BlockSpec((1, H_pad), lambda i: (0, 0)),          # w2 row (resident)
                pl.BlockSpec(memory_space=pltpu.MemorySpace.SMEM),   # b2 scalar
            ],
            out_specs=pl.BlockSpec((1, 1, tm), lambda i: (i, 0, 0)),  # lane-dense row
        ),
        compiler_params=pltpu.CompilerParams(
            dimension_semantics=("parallel",),
            vmem_limit_bytes=vmem_limit),
        cost_estimate=pl.CostEstimate(
            flops=int(flops), transcendentals=0,
            bytes_accessed=int(bytes_accessed)),
    )(spans_flat, w1, b1, w2_row, b2)

    return out.reshape(-1)[:M].reshape(batch_size, num_spans)


def init_params(key, span_dim, hidden=100):
    # Deterministic synthetic init (mimics nn.Linear's uniform fan-in scaling).
    k1, k2, k3, k4 = jax.random.split(key, 4)
    bound1 = 1.0 / jnp.sqrt(span_dim)
    bound2 = 1.0 / jnp.sqrt(hidden)
    w1 = jax.random.uniform(k1, (span_dim, hidden), jnp.float32, -bound1, bound1)
    b1 = jax.random.uniform(k2, (1, hidden), jnp.float32, -bound1, bound1)
    w2 = jax.random.uniform(k3, (hidden, 1), jnp.float32, -bound2, bound2)
    b2 = jax.random.uniform(k4, (1, 1), jnp.float32, -bound2, bound2)
    return w1, b1, w2, b2


if __name__ == "__main__":
    # Small shapes consistent with the forward pass.
    batch_size, num_spans, max_span_width, span_dim = 2, 8, 5, 32
    gate_threshold = 0.3  # unused in forward (kept for parity with the module)

    key = jax.random.PRNGKey(0)
    k_spans, k_params = jax.random.split(key)

    spans_tensor = jax.random.normal(
        k_spans, (batch_size * num_spans, max_span_width, span_dim), jnp.float32)
    # Module only uses spans_mask for its shape (no masking before the max-pool).
    spans_mask = jnp.ones((batch_size, num_spans, max_span_width), jnp.float32)

    params = init_params(k_params, span_dim)

    gate_logit = span_gate_forward(spans_tensor, spans_mask, params)
    gate_logit = jax.block_until_ready(gate_logit)

    # Pure-JAX reference check (unpadded params).
    w1, b1, w2, b2 = params
    pooled_ref = jnp.max(spans_tensor, axis=1)
    ref = (jnp.maximum(pooled_ref @ w1 + b1, 0.0) @ w2 + b2).reshape(
        batch_size, num_spans)
    assert gate_logit.shape == (batch_size, num_spans)
    assert jnp.allclose(gate_logit, ref, atol=1e-5, rtol=1e-5)

    print("KERNEL_OK")
</pallas_src>

<mosaic_0001>
module attributes {stable_mosaic.version = 11 : i64} {
  func.func @span_gate_kernel(%arg0: i32, %arg1: memref<8x160xf32, #tpu.memory_space<vmem>>, %arg2: memref<32x128xf32, #tpu.memory_space<vmem>>, %arg3: memref<1x128xf32, #tpu.memory_space<vmem>>, %arg4: memref<1x128xf32, #tpu.memory_space<vmem>>, %arg5: memref<1x1xf32, #tpu.memory_space<smem>>, %arg6: memref<1x1x8xf32, #tpu.memory_space<vmem>>) attributes {dimension_semantics = [#tpu.dimension_semantics<parallel>], iteration_bounds = array<i64: 2>, scalar_prefetch = 0 : i64, scratch_operands = 0 : i64, tpu.core_type = #tpu.core_type<tc>, window_params = [{transform_indices = @transform_0, window_bounds = array<i64: 8, 160>}, {pipeline_mode = #tpu.pipeline_mode<synchronous>, transform_indices = @transform_1, window_bounds = array<i64: 32, 128>}, {pipeline_mode = #tpu.pipeline_mode<synchronous>, transform_indices = @transform_2, window_bounds = array<i64: 1, 128>}, {pipeline_mode = #tpu.pipeline_mode<synchronous>, transform_indices = @transform_3, window_bounds = array<i64: 1, 128>}, {transform_indices = @transform_4, window_bounds = array<i64: 1, 1>}, {transform_indices = @transform_5, window_bounds = array<i64: 1, 1, 8>}]} {
    %c0 = arith.constant 0 : index
    %c0_0 = arith.constant 0 : index
    %0 = vector.load %arg1[%c0, %c0_0] : memref<8x160xf32, #tpu.memory_space<vmem>>, vector<8x160xf32>
    %1 = vector.extract_strided_slice %0 {offsets = [0, 0], sizes = [8, 32], strides = [1, 1]} : vector<8x160xf32> to vector<8x32xf32>
    %2 = vector.extract_strided_slice %0 {offsets = [0, 32], sizes = [8, 32], strides = [1, 1]} : vector<8x160xf32> to vector<8x32xf32>
    %3 = arith.maximumf %1, %2 : vector<8x32xf32>
    %4 = vector.extract_strided_slice %0 {offsets = [0, 64], sizes = [8, 32], strides = [1, 1]} : vector<8x160xf32> to vector<8x32xf32>
    %5 = arith.maximumf %3, %4 : vector<8x32xf32>
    %6 = vector.extract_strided_slice %0 {offsets = [0, 96], sizes = [8, 32], strides = [1, 1]} : vector<8x160xf32> to vector<8x32xf32>
    %7 = arith.maximumf %5, %6 : vector<8x32xf32>
    %8 = vector.extract_strided_slice %0 {offsets = [0, 128], sizes = [8, 32], strides = [1, 1]} : vector<8x160xf32> to vector<8x32xf32>
    %9 = arith.maximumf %7, %8 : vector<8x32xf32>
    %c0_1 = arith.constant 0 : index
    %c0_2 = arith.constant 0 : index
    %10 = vector.load %arg2[%c0_1, %c0_2] : memref<32x128xf32, #tpu.memory_space<vmem>>, vector<32x128xf32>
    %cst = arith.constant dense<0.000000e+00> : vector<8x128xf32>
    %11 = tpu.matmul %9, %10, %cst {dimension_numbers = #tpu.dot_dimension_numbers<[1], [0], [0], [1], [0, 0, 1, 1], [], []>} : vector<8x32xf32>, vector<32x128xf32>, vector<8x128xf32> -> vector<8x128xf32>
    %c0_3 = arith.constant 0 : index
    %c0_4 = arith.constant 0 : index
    %12 = vector.load %arg3[%c0_3, %c0_4] : memref<1x128xf32, #tpu.memory_space<vmem>>, vector<1x128xf32>
    %13 = vector.broadcast %12 : vector<1x128xf32> to vector<8x128xf32>
    %14 = arith.addf %11, %13 : vector<8x128xf32>
    %cst_5 = arith.constant 0.000000e+00 : f32
    %15 = vector.broadcast %cst_5 : f32 to vector<8x128xf32>
    %16 = arith.maximumf %14, %15 : vector<8x128xf32>
    %c0_6 = arith.constant 0 : index
    %c0_7 = arith.constant 0 : index
    %17 = vector.load %arg4[%c0_6, %c0_7] : memref<1x128xf32, #tpu.memory_space<vmem>>, vector<1x128xf32>
    %18 = vector.broadcast %17 : vector<1x128xf32> to vector<8x128xf32>
    %19 = arith.mulf %16, %18 : vector<8x128xf32>
    %cst_8 = arith.constant dense<0.000000e+00> : vector<8xf32>
    %20 = vector.multi_reduction <add>, %19, %cst_8 [1] : vector<8x128xf32> to vector<8xf32>
    %c0_9 = arith.constant 0 : index
    %c0_10 = arith.constant 0 : index
    %21 = memref.load %arg5[%c0_9, %c0_10] : memref<1x1xf32, #tpu.memory_space<smem>>
    %22 = vector.broadcast %21 : f32 to vector<8xf32>
    %23 = arith.addf %20, %22 : vector<8xf32>
    %24 = vector.shape_cast %23 : vector<8xf32> to vector<1x1x8xf32>
    %c0_11 = arith.constant 0 : index
    %c0_12 = arith.constant 0 : index
    %c0_13 = arith.constant 0 : index
    %25 = vector.load %arg6[%c0_11, %c0_12, %c0_13] : memref<1x1x8xf32, #tpu.memory_space<vmem>>, vector<1x1x8xf32>
    tpu.vector_store %arg6[%c0_11, %c0_12, %c0_13], %24 {strides = array<i32>} : memref<1x1x8xf32, #tpu.memory_space<vmem>>, vector<1x1x8xf32>,
    return
  }
  func.func @transform_0(%arg0: i32) -> (i32, i32) {
    %c0_i32 = arith.constant 0 : i32
    %c0_i32_0 = arith.constant 0 : i32
    return %arg0, %c0_i32 : i32, i32
  }
  func.func @transform_1(%arg0: i32) -> (i32, i32) {
    %c0_i32 = arith.constant 0 : i32
    %c0_i32_0 = arith.constant 0 : i32
    %c0_i32_1 = arith.constant 0 : i32
    return %c0_i32, %c0_i32_0 : i32, i32
  }
  func.func @transform_2(%arg0: i32) -> (i32, i32) {
    %c0_i32 = arith.constant 0 : i32
    %c0_i32_0 = arith.constant 0 : i32
    %c0_i32_1 = arith.constant 0 : i32
    return %c0_i32, %c0_i32_0 : i32, i32
  }
  func.func @transform_3(%arg0: i32) -> (i32, i32) {
    %c0_i32 = arith.constant 0 : i32
    %c0_i32_0 = arith.constant 0 : i32
    %c0_i32_1 = arith.constant 0 : i32
    return %c0_i32, %c0_i32_0 : i32, i32
  }
  func.func @transform_4(%arg0: i32) -> (i32, i32) {
    %c0_i32 = arith.constant 0 : i32
    %c0_i32_0 = arith.constant 0 : i32
    %c0_i32_1 = arith.constant 0 : i32
    return %c0_i32, %c0_i32_0 : i32, i32
  }
  func.func @transform_5(%arg0: i32) -> (i32, i32, i32) {
    %c0_i32 = arith.constant 0 : i32
    %c0_i32_0 = arith.constant 0 : i32
    %c0_i32_1 = arith.constant 0 : i32
    return %arg0, %c0_i32, %c0_i32_0 : i32, i32, i32
  }
}

</mosaic_0001>

<llo_original>
// kernel: tpu_custom_call.1
$region0: #{tpu_custom_call.1}
  #allocation0 [shape = 'u32[]', space=smem, size = 0x4, offset = 0x4, fixed_abs, tag = 'smem constant byte address 0x4 - core index']
  #allocation1 [shape = 'u32[144,128]{1,0:T(1,128)}', space=vmem, size = 0x12000, scoped, tag = 'internal scratch']
  #allocation2 [shape = 'f32[1,1]{1,0:T(1,128)S(6)}', space=smem, size = 0x200, scoped, tag = 'scoped memory for tpu_custom_call.1']
  %s0 = inlined_call_operand.hbm [shape: f32[16,160], index: 0, kind: input, shape index: {}]
  %s1 = inlined_call_operand.hbm [shape: f32[32,128], index: 1, kind: input, shape index: {}]
  %s2 = inlined_call_operand.vmem [shape: f32[1,128], index: 2, kind: input, shape index: {}]
  %s3 = inlined_call_operand.vmem [shape: f32[1,128], index: 3, kind: input, shape index: {}]
  %s4 = inlined_call_operand.<no memory space> [shape: f32[1,1], index: 4, kind: input, shape index: {}]
  %s5 = inlined_call_operand.hbm [shape: f32[2,1,8], index: 5, kind: output, shape index: {}]
  %s6 = sld [smem:[#allocation0]]
  $region61: #{tpu_custom_call.1} parent=0
    _
  %s8 = ssub.s32 1, %s6
  %s9 = scalar_select 0, %s8, %s6
  %10 = sst [smem:[#allocation2]] %s4
  $region1: #{tpu_custom_call.1} parent=0
    #allocation3 [shape = 'u8[16384]{0}', space=vmem, size = 0x4000, scoped, tag = 'input window, operand 0']
    #allocation4 [shape = 's32[2]{0}', space=sflag, size = 0x8, scoped, tag = 'scoped memory for tpu_custom_call.1']
    #allocation5 [shape = 's32[2]{0}', space=sflag, size = 0x8, scoped, tag = 'scoped memory for tpu_custom_call.1']
    #allocation6 [shape = 'u8[16384]{0}', space=vmem, size = 0x4000, scoped, tag = 'input window, operand 1, single buffered']
    #allocation7 [shape = 's32[1]{0}', space=sflag, size = 0x4, scoped, tag = 'scoped memory for tpu_custom_call.1']
    #allocation8 [shape = 'u8[1024]{0}', space=vmem, size = 0x400, scoped, tag = 'output window, operand 0']
    %11 = vsyncpa [#allocation4], 0
    %s12 = scalar_lea.sflag [#allocation4], 1
    %13 = vsyncpa %s12, 0
    %14 = vsyncpa [#allocation7], 0
    %15 = vsyncpa [#allocation5], 0
    %s16 = scalar_lea.sflag [#allocation5], 1
    %17 = vsyncpa %s16, 0
    loop: start=0, step=1, limit=4
    $region2: #{tpu_custom_call.1} parent=1 // loop_pre_header
      _
    $region3: #{tpu_custom_call.1} parent=1 // loop_header
      %s19 = sphi 0, %s23
      %p20 = scmp.ge.s32.totalorder %s19, 4
      %s29 = sphi 0, %s31
      %s32 = sphi 0, %s29
      %s33 = sphi 0, %s32
      %s49 = sphi 0, %s33
      %s53 = sphi 0, %s53
      %s55 = sphi 0, %s53
      %s56 = sphi 0, %s55
      %s70 = sphi 0, %s56
      %s74 = sphi 0, %s74
      %s76 = sphi 0, %s74
      %s77 = sphi 0, %s76
      %s91 = sphi 0, %s77
      %s95 = sphi 0, %s95
      %s97 = sphi 0, %s95
      %s98 = sphi 0, %s97
      %s112 = sphi 0, %s98
      %s116 = sphi 0, %s116
      %s118 = sphi 0, %s116
      %s119 = sphi 0, %s118
      %s133 = sphi 0, %s119
      %s139 = sphi 0, %s141
      %s142 = sphi 0, %s139
      %s143 = sphi 0, %s142
      %s159 = sphi 0, %s143
    $region4: #{tpu_custom_call.1} parent=1 // loop_header_branch
      %22 = sbr.rel (%p20) target = $region8
    $region5: #{tpu_custom_call.1} parent=1 // loop_body
      %s24 = ssub.s32 %s19, 1
      %s25 = ssub.s32 %s19, 2
      %s26 = sadd.s32 %s19, 1
      %s27 = ssub.s32 %s19, %s26
      %p28 = scmp.eq.s32.totalorder %s27, 0
      %s30 = sadd.s32 %s29, 1
      %s31 = scalar_select %p28, %s29, %s30
      %p34 = pneg %p28
      %p35 = scmp.eq.s32.totalorder %s19, 1
      %p36 = por %p34, %p35
      %p37 = scmp.ne.s32.totalorder %s29, %s32
      %p38 = scmp.eq.s32.totalorder %s19, 0
      %p39 = por %p37, %p38
      %p40 = scmp.ne.s32.totalorder %s29, %s32
      %p41 = scmp.eq.s32.totalorder %s24, 1
      %p42 = por %p40, %p41
      %p43 = scmp.ne.s32.totalorder %s32, %s33
      %p44 = scmp.eq.s32.totalorder %s24, 0
      %p45 = por %p43, %p44
      %p46 = scmp.ne.s32.totalorder %s32, %s33
      %p47 = scmp.eq.s32.totalorder %s25, 1
      %p48 = por %p46, %p47
      %p50 = scmp.ne.s32.totalorder %s33, %s49
      %p51 = scmp.eq.s32.totalorder %s25, 0
      %p52 = por %p50, %p51
      %s54 = sadd.s32 %s53, 1
      %p57 = scmp.eq.s32.totalorder %s19, 1
      %p58 = scmp.ne.s32.totalorder %s53, %s55
      %p59 = scmp.eq.s32.totalorder %s19, 0
      %p60 = por %p58, %p59
      %p61 = scmp.ne.s32.totalorder %s53, %s55
      %p62 = scmp.eq.s32.totalorder %s24, 1
      %p63 = por %p61, %p62
      %p64 = scmp.ne.s32.totalorder %s55, %s56
      %p65 = scmp.eq.s32.totalorder %s24, 0
      %p66 = por %p64, %p65
      %p67 = scmp.ne.s32.totalorder %s55, %s56
      %p68 = scmp.eq.s32.totalorder %s25, 1
      %p69 = por %p67, %p68
      %p71 = scmp.ne.s32.totalorder %s56, %s70
      %p72 = scmp.eq.s32.totalorder %s25, 0
      %p73 = por %p71, %p72
      %s75 = sadd.s32 %s74, 1
      %p78 = scmp.eq.s32.totalorder %s19, 1
      %p79 = scmp.ne.s32.totalorder %s74, %s76
      %p80 = scmp.eq.s32.totalorder %s19, 0
      %p81 = por %p79, %p80
      %p82 = scmp.ne.s32.totalorder %s74, %s76
      %p83 = scmp.eq.s32.totalorder %s24, 1
      %p84 = por %p82, %p83
      %p85 = scmp.ne.s32.totalorder %s76, %s77
      %p86 = scmp.eq.s32.totalorder %s24, 0
      %p87 = por %p85, %p86
      %p88 = scmp.ne.s32.totalorder %s76, %s77
      %p89 = scmp.eq.s32.totalorder %s25, 1
      %p90 = por %p88, %p89
      %p92 = scmp.ne.s32.totalorder %s77, %s91
      %p93 = scmp.eq.s32.totalorder %s25, 0
      %p94 = por %p92, %p93
      %s96 = sadd.s32 %s95, 1
      %p99 = scmp.eq.s32.totalorder %s19, 1
      %p100 = scmp.ne.s32.totalorder %s95, %s97
      %p101 = scmp.eq.s32.totalorder %s19, 0
      %p102 = por %p100, %p101
      %p103 = scmp.ne.s32.totalorder %s95, %s97
      %p104 = scmp.eq.s32.totalorder %s24, 1
      %p105 = por %p103, %p104
      %p106 = scmp.ne.s32.totalorder %s97, %s98
      %p107 = scmp.eq.s32.totalorder %s24, 0
      %p108 = por %p106, %p107
      %p109 = scmp.ne.s32.totalorder %s97, %s98
      %p110 = scmp.eq.s32.totalorder %s25, 1
      %p111 = por %p109, %p110
      %p113 = scmp.ne.s32.totalorder %s98, %s112
      %p114 = scmp.eq.s32.totalorder %s25, 0
      %p115 = por %p113, %p114
      %s117 = sadd.s32 %s116, 1
      %p120 = scmp.eq.s32.totalorder %s19, 1
      %p121 = scmp.ne.s32.totalorder %s116, %s118
      %p122 = scmp.eq.s32.totalorder %s19, 0
      %p123 = por %p121, %p122
      %p124 = scmp.ne.s32.totalorder %s116, %s118
      %p125 = scmp.eq.s32.totalorder %s24, 1
      %p126 = por %p124, %p125
      %p127 = scmp.ne.s32.totalorder %s118, %s119
      %p128 = scmp.eq.s32.totalorder %s24, 0
      %p129 = por %p127, %p128
      %p130 = scmp.ne.s32.totalorder %s118, %s119
      %p131 = scmp.eq.s32.totalorder %s25, 1
      %p132 = por %p130, %p131
      %p134 = scmp.ne.s32.totalorder %s119, %s133
      %p135 = scmp.eq.s32.totalorder %s25, 0
      %p136 = por %p134, %p135
      %s137 = ssub.s32 %s19, %s26
      %p138 = scmp.eq.s32.totalorder %s137, 0
      %s140 = sadd.s32 %s139, 1
      %s141 = scalar_select %p138, %s139, %s140
      %p144 = pneg %p138
      %p145 = scmp.eq.s32.totalorder %s19, 1
      %p146 = por %p144, %p145
      %p147 = scmp.ne.s32.totalorder %s139, %s142
      %p148 = scmp.eq.s32.totalorder %s19, 0
      %p149 = por %p147, %p148
      %p150 = scmp.ne.s32.totalorder %s139, %s142
      %p151 = scmp.eq.s32.totalorder %s24, 1
      %p152 = por %p150, %p151
      %p153 = scmp.ne.s32.totalorder %s142, %s143
      %p154 = scmp.eq.s32.totalorder %s24, 0
      %p155 = por %p153, %p154
      %p156 = scmp.ne.s32.totalorder %s142, %s143
      %p157 = scmp.eq.s32.totalorder %s25, 1
      %p158 = por %p156, %p157
      %p160 = scmp.ne.s32.totalorder %s143, %s159
      %p161 = scmp.eq.s32.totalorder %s25, 0
      %p162 = por %p160, %p161
      %p163 = scmp.le.s32.totalorder 1, %s19
      %p164 = scmp.lt.s32.totalorder %s19, 3
      %p165 = pnand %p163, %p164
      %p166 = pneg %p165
      // Predicated region
      $region9: #{tpu_custom_call.1} parent=5 // pred_check
        _
      $region10: #{tpu_custom_call.1} parent=5 // pred_check_branch
        %168 = sbr.rel (%p165) target = $region12
      $region11: #{tpu_custom_call.1} parent=5 // pred_region
        %s169 = ssub.s32 %s19, 1
        // Predicated region
        $region13: #{tpu_custom_call.1} parent=11 // pred_check
          %p170 = pneg %p66
        $region14: #{tpu_custom_call.1} parent=11 // pred_check_branch
          %172 = sbr.rel (%p170) target = $region16
        $region15: #{tpu_custom_call.1} parent=11 // pred_region
          %s174 = ssub.s32 512, 512
          %175 = vsyncadd [#allocation7], %s174
          %s176 = sshll.u32 [#allocation6], 4
          %s177 = int_to_ptr.vmem [resolvable:$true] %s176
          %182 = dma.hbm_to_vmem [thread:$0]  %s1, 512, %s177, [#allocation7], 128, 128, 8
        $region16: #{tpu_custom_call.1} parent=11 // pred_fallthru
          _
        // Predicated region
        $region17: #{tpu_custom_call.1} parent=11 // pred_check
          %p183 = pneg %p87
        $region18: #{tpu_custom_call.1} parent=11 // pred_check_branch
          %185 = sbr.rel (%p183) target = $region20
        $region19: #{tpu_custom_call.1} parent=11 // pred_region
          _
        $region20: #{tpu_custom_call.1} parent=11 // pred_fallthru
          _
        // Predicated region
        $region21: #{tpu_custom_call.1} parent=11 // pred_check
          %p186 = pneg %p108
        $region22: #{tpu_custom_call.1} parent=11 // pred_check_branch
          %188 = sbr.rel (%p186) target = $region24
        $region23: #{tpu_custom_call.1} parent=11 // pred_region
          _
        $region24: #{tpu_custom_call.1} parent=11 // pred_fallthru
          _
        // Predicated region
        $region25: #{tpu_custom_call.1} parent=11 // pred_check
          %p189 = pneg %p129
        $region26: #{tpu_custom_call.1} parent=11 // pred_check_branch
          %191 = sbr.rel (%p189) target = $region28
        $region27: #{tpu_custom_call.1} parent=11 // pred_region
          _
        $region28: #{tpu_custom_call.1} parent=11 // pred_fallthru
          _
      $region12: #{tpu_custom_call.1} parent=5 // pred_fallthru
        _
      %p192 = scmp.lt.s32.totalorder %s19, 2
      // Predicated region
      $region29: #{tpu_custom_call.1} parent=5 // pred_check
        %p193 = pneg %p192
      $region30: #{tpu_custom_call.1} parent=5 // pred_check_branch
        %195 = sbr.rel (%p193) target = $region32
      $region31: #{tpu_custom_call.1} parent=5 // pred_region
        // Predicated region
        $region33: #{tpu_custom_call.1} parent=31 // pred_check
          %p196 = pneg %p39
        $region34: #{tpu_custom_call.1} parent=31 // pred_check_branch
          %198 = sbr.rel (%p196) target = $region36
        $region35: #{tpu_custom_call.1} parent=31 // pred_region
          %s199 = sand.u32 %s29, 1
          %s200 = scalar_lea.sflag [#allocation4], %s199
          %s201 = sand.u32 %s29, 1
          %s202 = smul.addr %s201, 16
          %s203 = scalar_lea.vmem [#allocation3], %s202
          %s205 = ssub.s32 256, 256
          %206 = vsyncadd %s200, %s205
          %s207 = smul.addr %s19, 2
          %s208 = smul.addr %s207, 128
          %s209 = scalar_lea.hbm %s0, %s208
          %s211 = sshll.u32 %s203, 4
          %s212 = int_to_ptr.vmem [resolvable:$true] %s211
          %214 = dma.hbm_to_vmem [thread:$0]  %s209, 256, %s212, %s200
        $region36: #{tpu_custom_call.1} parent=31 // pred_fallthru
          _
      $region32: #{tpu_custom_call.1} parent=5 // pred_fallthru
        _
      %p215 = scmp.le.s32.totalorder 1, %s19
      %p216 = scmp.lt.s32.totalorder %s19, 3
      %p217 = pnand %p215, %p216
      %p218 = pneg %p217
      // Predicated region
      $region37: #{tpu_custom_call.1} parent=5 // pred_check
        _
      $region38: #{tpu_custom_call.1} parent=5 // pred_check_branch
        %220 = sbr.rel (%p217) target = $region40
      $region39: #{tpu_custom_call.1} parent=5 // pred_region
        %s221 = ssub.s32 %s19, 1
        %s222 = sand.u32 %s32, 1
        %s223 = scalar_lea.sflag [#allocation4], %s222
        %s224 = sand.u32 %s32, 1
        %s225 = smul.addr %s224, 16
        %s226 = scalar_lea.vmem [#allocation3], %s225
        // Predicated region
        $region41: #{tpu_custom_call.1} parent=39 // pred_check
          %p227 = pneg %p45
        $region42: #{tpu_custom_call.1} parent=39 // pred_check_branch
          %229 = sbr.rel (%p227) target = $region44
        $region43: #{tpu_custom_call.1} parent=39 // pred_region
          %230 = dma.done %s223, 256
        $region44: #{tpu_custom_call.1} parent=39 // pred_fallthru
          _
        // Predicated region
        $region45: #{tpu_custom_call.1} parent=39 // pred_check
          %p231 = pneg %p66
        $region46: #{tpu_custom_call.1} parent=39 // pred_check_branch
          %233 = sbr.rel (%p231) target = $region48
        $region47: #{tpu_custom_call.1} parent=39 // pred_region
          %234 = dma.done [#allocation7], 512
        $region48: #{tpu_custom_call.1} parent=39 // pred_fallthru
          _
        %s235 = sand.u32 %s32, 1
        %s236 = scalar_lea.sflag [#allocation4], %s235
        %s237 = sand.u32 %s32, 1
        %s238 = smul.addr %s237, 16
        %s239 = scalar_lea.vmem [#allocation3], %s238
        %p240 = pneg %p45
        %p241 = pneg %p42
        %p242 = pneg %p66
        %p243 = pneg %p63
        %p244 = pneg %p87
        %p245 = pneg %p84
        %p246 = pneg %p108
        %p247 = pneg %p105
        %p248 = pneg %p129
        %p249 = pneg %p126
        %p250 = pneg %p155
        %p251 = pneg %p152
        %s252 = sand.u32 %s142, 1
        %s253 = scalar_lea.sflag [#allocation5], %s252
        %s254 = sand.u32 %s142, 1
        %s255 = scalar_lea.vmem [#allocation8], %s254
        %v256 = vld [vmem:[%s226] sm:$0xff]
        %v257 = vld [vmem:[%s226 + $0x8] sm:$0xff]
        %259 = vrot.lane.b32.xlu0 %v256, 96
        %v260 = vpop.permute.xlu0 %259
        %v262 = vmax.f32 %v256, %v260
        %263 = vrot.lane.b32.xlu0 %v256, 64
        %v264 = vpop.permute.xlu0 %263
        %v266 = vmax.f32 %v262, %v264
        %267 = vrot.lane.b32.xlu0 %v256, 32
        %v268 = vpop.permute.xlu0 %267
        %v270 = vmax.f32 %v266, %v268
        %v271 = vmax.f32 %v270, %v257
        %v272 = vld [vmem:[#allocation6] sm:$0xff]
        %v273 = vld [vmem:[#allocation6 + $0x8] sm:$0xff]
        %v274 = vld [vmem:[#allocation6 + $0x10] sm:$0xff]
        %v275 = vld [vmem:[#allocation6 + $0x18] sm:$0xff]
        %v276 = vld [vmem:[%s2] sm:$0x1]
        %v278 = vlaneseq
        %v279 = vshrl.u32 %v278, 7
        %v280 = vsub.s32 0, %v279
        %v281 = vrot.slane %v276, %v280
        %vm283 = vcmask 261120
        %v285 = vsel %vm283, %v271, 0
        %287 = vmatprep.subr.mxu0 0.0
        %288 = vmatpush1.msra.mxu0 %v272
        %289 = vmatprep.subr.mxu0 0.0
        %290 = vmatpush1.msra.mxu0 %v273
        %291 = vmatprep.subr.mxu0 0.0
        %292 = vmatpush1.msra.mxu0 %v274
        %293 = vmatprep.subr.mxu0 0.0
        %294 = vmatpush1.msra.mxu0 %v275
        %295 = vmatprep.subr.mxu0 0.0
        %296 = vmatpush1.msra.mxu0 0.0
        %297 = vmatprep.subr.mxu0 0.0
        %298 = vmatpush1.msra.mxu0 0.0
        %299 = vmatprep.subr.mxu0 0.0
        %300 = vmatpush1.msra.mxu0 0.0
        %301 = vmatprep.subr.mxu0 0.0
        %302 = vmatpush1.msra.mxu0 0.0
        %303 = vmatprep.subr.mxu0 0.0
        %304 = vmatpush1.msra.mxu0 0.0
        %305 = vmatprep.subr.mxu0 0.0
        %306 = vmatpush1.msra.mxu0 0.0
        %307 = vmatprep.subr.mxu0 0.0
        %308 = vmatpush1.msra.mxu0 0.0
        %309 = vmatprep.subr.mxu0 0.0
        %310 = vmatpush1.msra.mxu0 0.0
        %311 = vmatprep.subr.mxu0 0.0
        %312 = vmatpush1.msra.mxu0 0.0
        %313 = vmatprep.subr.mxu0 0.0
        %314 = vmatpush1.msra.mxu0 0.0
        %315 = vmatprep.subr.mxu0 0.0
        %316 = vmatpush1.msra.mxu0 0.0
        %317 = vmatprep.subr.mxu0 0.0
        %318 = vmatpush1.msra.mxu0 0.0
        %319 = vmatprep.subr.mxu0 0.0
        %320 = vmatpush1.msra.mxu0 0.0
        %321 = vmatprep.subr.mxu0 0.0
        %322 = vmatpush1.msra.mxu0 0.0
        %323 = vmatprep.subr.mxu0 0.0
        %324 = vmatpush1.msra.mxu0 0.0
        %325 = vmatprep.subr.mxu0 0.0
        %326 = vmatpush1.msra.mxu0 0.0
        %327 = vmatprep.subr.mxu0 0.0
        %328 = vmatpush1.msra.mxu0 0.0
        %329 = vmatprep.subr.mxu0 0.0
        %330 = vmatpush1.msra.mxu0 0.0
        %331 = vmatprep.subr.mxu0 0.0
        %332 = vmatpush1.msra.mxu0 0.0
        %333 = vmatprep.subr.mxu0 0.0
        %334 = vmatpush1.msra.mxu0 0.0
        %335 = vmatprep.subr.mxu0 0.0
        %336 = vmatpush1.msra.mxu0 0.0
        %337 = vmatprep.subr.mxu0 0.0
        %338 = vmatpush1.msra.mxu0 0.0
        %339 = vmatprep.subr.mxu0 0.0
        %340 = vmatpush1.msra.mxu0 0.0
        %341 = vmatprep.subr.mxu0 0.0
        %342 = vmatpush1.msra.mxu0 0.0
        %343 = vmatprep.subr.mxu0 0.0
        %344 = vmatpush1.msra.mxu0 0.0
        %345 = vmatprep.subr.mxu0 0.0
        %346 = vmatpush1.msra.mxu0 0.0
        %347 = vmatprep.subr.mxu0 0.0
        %348 = vmatpush1.msra.mxu0 0.0
        %349 = vmatprep.subr.mxu0 0.0
        %350 = vmatpush1.msra.mxu0 0.0
        %351 = vmatprep.mubr.f32.mxu0 0.0
        %352 = vmatmul.mubr.f32.gmra.mrb[0].mxu0 %v285
        %v353 = vpop.f32.mrb[0].mxu0
        %v354 = vadd.f32 %v281, %v353
        %v355 = vpop.f32.mrb[0].mxu0
        %356 = vdwg.mxu0
        %v357 = vmax.f32 %v354, 0.0
        %v358 = vld [vmem:[%s3] sm:$0x1]
        %v360 = vlaneseq
        %v361 = vshrl.u32 %v360, 7
        %v362 = vsub.s32 0, %v361
        %v363 = vrot.slane %v358, %v362
        %v365 = vmul.f32 %v357, %v363
        %366 = vadd.xlane.f32.xlu0 %v365
        %v367 = vpop.xlane.xlu0 %366
        %s368 = sld [smem:[#allocation2]]
        %v369 = vstv %s368
        %v370 = vadd.f32 %v367, %v369
        %v372 = vlaneseq
        %v373 = vand.u32 %v372, 127
        %v374 = vlaneseq
        %v375 = vshrl.u32 %v374, 7
        %v376 = vsub.s32 %v373, %v375
        %v377 = vrot.slane %v370, %v376
        %vm379 = vcmask 57344
        %380 = vst.msk [vmem:[%s255] sm:$0x1] %vm379, %v377
        %s381 = sand.u32 %s142, 1
        %s382 = scalar_lea.sflag [#allocation5], %s381
        %s383 = sand.u32 %s142, 1
        %s384 = scalar_lea.vmem [#allocation8], %s383
        // Predicated region
        $region49: #{tpu_custom_call.1} parent=39 // pred_check
          %p385 = pneg %p152
        $region50: #{tpu_custom_call.1} parent=39 // pred_check_branch
          %387 = sbr.rel (%p385) target = $region52
        $region51: #{tpu_custom_call.1} parent=39 // pred_region
          %s389 = ssub.s32 16, 16
          %390 = vsyncadd %s382, %s389
          %s391 = smul.addr %s24, 16
          %s392 = scalar_lea.hbm %s5, %s391
          %s394 = sshll.u32 %s384, 4
          %s395 = int_to_ptr.vmem [resolvable:$true] %s394
          %397 = dma.vmem_to_hbm [thread:$0]  %s395, 16, %s392, %s382
        $region52: #{tpu_custom_call.1} parent=39 // pred_fallthru
          _
      $region40: #{tpu_custom_call.1} parent=5 // pred_fallthru
        _
      %p398 = scmp.le.s32.totalorder 2, %s19
      // Predicated region
      $region53: #{tpu_custom_call.1} parent=5 // pred_check
        %p399 = pneg %p398
      $region54: #{tpu_custom_call.1} parent=5 // pred_check_branch
        %401 = sbr.rel (%p399) target = $region56
      $region55: #{tpu_custom_call.1} parent=5 // pred_region
        %s402 = ssub.s32 %s19, 2
        // Predicated region
        $region57: #{tpu_custom_call.1} parent=55 // pred_check
          %p403 = pneg %p158
        $region58: #{tpu_custom_call.1} parent=55 // pred_check_branch
          %405 = sbr.rel (%p403) target = $region60
        $region59: #{tpu_custom_call.1} parent=55 // pred_region
          %s406 = sand.u32 %s143, 1
          %s407 = scalar_lea.sflag [#allocation5], %s406
          %s408 = sand.u32 %s143, 1
          %s409 = scalar_lea.vmem [#allocation8], %s408
          %410 = dma.done %s407, 16
        $region60: #{tpu_custom_call.1} parent=55 // pred_fallthru
          _
      $region56: #{tpu_custom_call.1} parent=5 // pred_fallthru
        _
    $region6: #{tpu_custom_call.1} parent=1 // loop_footer
      %s23 = sadd.s32 1, %s19
    $region7: #{tpu_custom_call.1} parent=1 // loop_footer_branch
      %18 = sbr.rel target = $region3
    $region8: #{tpu_custom_call.1} parent=1 // loop_exit
      _
    %411 = vsyncpa [#allocation4], 1
    %s412 = scalar_lea.sflag [#allocation4], 1
    %413 = vsyncpa %s412, 1
    %414 = vsyncpa [#allocation7], 1
    %415 = vsyncpa [#allocation5], 1
    %s416 = scalar_lea.sflag [#allocation5], 1
    %417 = vsyncpa %s416, 1

</llo_original>
